<compile_context>
chip_gen: v7x
topology: tpu7x:2x2x1
jax: 0.10.0
libtpu: 0.0.40
codegen_flags: <defaults>
</compile_context>

<pallas_src>
import jax
import jax.numpy as jnp
from jax.experimental import pallas as pl
from jax.experimental.pallas import tpu as pltpu


# ----------------------------------------------------------------------------
# Kernels
# ----------------------------------------------------------------------------

def _conv_pool_kernel(x_ref, w1, b1, w2, b2, w3, g_ref):
    """Pointwise conv1/2 (+folded BN, ReLU), raw conv3 matmul, running max.

    x_ref block: (Bt, TN, k) channels-last points.  Any padded points are
                 edge-replicated real points, so they never perturb the max.
    g_ref block: (Bt, 8, 128) == (Bt, 1024) raw (pre-bias, pre-ReLU) max
                 accumulator, resident across the point-tile grid axis.
    """
    nt = pl.program_id(1)
    Bt, TN, kk = x_ref.shape

    # Flatten batch*points into the MXU M dimension.
    x = x_ref[...].reshape(Bt * TN, kk)

    # conv1 + bn1 + relu : (Bt*TN, k) @ (k, 64)  -- tiny K, keep f32.
    h = jnp.dot(x, w1[...], preferred_element_type=jnp.float32) + b1[...]
    h = jnp.maximum(h, 0.0)

    # conv2 + bn2 + relu : bf16 operands (MXU-native rate), f32 accumulate.
    w2v = w2[...]
    h = jnp.dot(h.astype(w2v.dtype), w2v,
                preferred_element_type=jnp.float32) + b2[...]
    h = jnp.maximum(h, 0.0)

    # conv3: raw matmul only.  Bias + ReLU are hoisted past the max-pool
    # (applied once in the FC kernel) -- exact because the bias is a
    # per-column constant and ReLU is monotone.
    w3v = w3[...]
    h = jnp.dot(h.astype(w3v.dtype), w3v, preferred_element_type=jnp.float32)

    # Per-batch max over this tile of points (raw values).
    c3 = h.shape[-1]
    tile_max = jnp.max(h.reshape(Bt, TN, c3), axis=1)        # (Bt, 1024)
    tile_max = tile_max.reshape(g_ref.shape)                 # (Bt, 8, 128)

    @pl.when(nt == 0)
    def _():
        g_ref[...] = tile_max

    @pl.when(nt > 0)
    def _():
        g_ref[...] = jnp.maximum(g_ref[...], tile_max)


def _fc_kernel(g_ref, b3, wf1, bf1, wf2, bf2, wf3, bf3, out_ref):
    """Hoisted conv3 epilogue + fc1/fc2 (+folded BN, ReLU) + fc3 (+identity).

    Runs at M = batch-tile rows and writes one dense (Bfc, k*k) slab.
    """
    # Finish conv3: relu(raw_max + b3) -- exact (see _conv_pool_kernel).
    g = jnp.maximum(g_ref[...] + b3[...], 0.0)

    wf1v = wf1[...]
    f = jnp.dot(g.astype(wf1v.dtype), wf1v,
                preferred_element_type=jnp.float32) + bf1[...]
    f = jnp.maximum(f, 0.0)

    f = jnp.dot(f, wf2[...], preferred_element_type=jnp.float32) + bf2[...]
    f = jnp.maximum(f, 0.0)

    # fc3 bias already includes the flattened k x k identity.
    out_ref[...] = jnp.dot(f, wf3[...],
                           preferred_element_type=jnp.float32) + bf3[...]


# ----------------------------------------------------------------------------
# Tiling / config helpers
# ----------------------------------------------------------------------------

def _cdiv(a, b):
    return -(-a // b)


def _round_up(a, m):
    return _cdiv(a, m) * m


def _tpu_config():
    """Per-generation point tile / batch tile / VMEM limit."""
    try:
        kind = jax.devices()[0].device_kind.lower()
    except Exception:
        kind = ""
    if ("v2" in kind) or ("v3" in kind):
        # 16 MiB VMEM parts: keep the conv3 intermediate tiny.
        return dict(point_tile=128, bt_pref=4, vmem_limit=12 * 1024 * 1024)
    if ("v4" in kind) or ("v5" in kind) or ("v6" in kind):
        # 128 MiB VMEM: big point tiles amortize per-step pipeline overhead.
        return dict(point_tile=1024, bt_pref=8, vmem_limit=96 * 1024 * 1024)
    # v7x (64 MiB VMEM per TC, 2 TCs) and unknown chips: conservative tiles so
    # the live conv3 intermediate stays ~8 MB and VMEM keeps pipeline headroom.
    return dict(point_tile=256, bt_pref=8, vmem_limit=48 * 1024 * 1024)


def _choose_point_tile(N, preferred):
    """Multiple-of-8 point tile <= preferred with small padding waste.

    Candidates are the preferred tile and its halvings (>=32); the largest one
    whose edge-padding waste is <= ~12.5% of N wins (fallback: least waste).
    """
    cap = _round_up(max(N, 1), 8)
    cands = set()
    t = max(int(preferred), 32)
    while t >= 32:
        cands.add(min(_round_up(t, 8), cap))
        t //= 2
    cands = sorted(cands, reverse=True)
    for t in cands:
        if _round_up(N, t) - N <= max(N // 8, 8):
            return t
    return min(cands, key=lambda t: (_round_up(N, t), -t))


def _choose_batch_tile(B, preferred):
    """Exact divisor of B, <= preferred; when B >= 2 also guarantee >= 2 steps
    on the parallel batch axis so both v7x TensorCores get work."""
    cap = min(preferred, B)
    if B >= 2:
        cap = min(cap, B // 2)
    cap = max(cap, 1)
    for t in range(cap, 0, -1):
        if B % t == 0:
            return t
    return 1


def _choose_fc_tile(B):
    if B <= 1024:
        return B
    for t in range(1024, 0, -8):
        if B % t == 0:
            return t
    return B


def _const_spec(a):
    # Constant (weight/bias) operand: one full block, same for every grid step.
    # TODO(synk): on v7x, single-buffer these via pipeline_mode=pl.Buffered(1)
    # to reclaim ~2-3 MB of VMEM; omitted for cross-version portability.
    return pl.BlockSpec(a.shape, lambda *_: (0,) * a.ndim)


# ----------------------------------------------------------------------------
# Wrapper
# ----------------------------------------------------------------------------

def stnkd_forward(x_bkn, params, k, *, point_tile=None):
    """x_bkn: (B, k, N) float32 -- PyTorch NCW layout.  Returns (B, k, k)."""
    B, kin, N = x_bkn.shape
    assert kin == k
    (w1, b1, w2, b2, w3, b3, wf1, bf1, wf2, bf2, wf3, bf3) = params
    C3 = w3.shape[-1]                                   # 1024
    assert C3 % 128 == 0

    cfg = _tpu_config()
    if point_tile is None:
        point_tile = cfg["point_tile"]
    vmem_limit = cfg["vmem_limit"]

    # Channels-last for per-point matmuls.
    # TODO(synk): consume the NCW input directly ((Bt, k, TN) blocks + a small
    # in-kernel transpose) to drop this HBM pass and the k->128 lane padding
    # of the input buffers; kept NWC here for lowering robustness.
    x = jnp.transpose(x_bkn, (0, 2, 1))                 # (B, N, k)

    TN = _choose_point_tile(N, point_tile)
    N_pad = _round_up(N, TN)
    if N_pad != N:
        # Edge-replicate real points: duplicates never change the max-pool, so
        # ragged N (e.g. 2500) needs no in-kernel masking and no giant tiles.
        x = jnp.pad(x, ((0, 0), (0, N_pad - N), (0, 0)), mode="edge")

    Bt = _choose_batch_tile(B, cfg["bt_pref"])

    # ---- Stage 1: conv1/conv2 + raw conv3, global max-pool -> (B, 8, 128) ---
    g = pl.pallas_call(
        _conv_pool_kernel,
        out_shape=jax.ShapeDtypeStruct((B, C3 // 128, 128), jnp.float32),
        grid_spec=pltpu.PrefetchScalarGridSpec(
            num_scalar_prefetch=0,
            grid=(B // Bt, N_pad // TN),
            in_specs=[
                pl.BlockSpec((Bt, TN, k), lambda b, n: (b, n, 0)),
                _const_spec(w1), _const_spec(b1),
                _const_spec(w2), _const_spec(b2),
                _const_spec(w3),
            ],
            out_specs=pl.BlockSpec((Bt, C3 // 128, 128),
                                   lambda b, n: (b, 0, 0)),
        ),
        compiler_params=pltpu.CompilerParams(
            dimension_semantics=("parallel", "arbitrary"),
            vmem_limit_bytes=vmem_limit),
    )(x, w1, b1, w2, b2, w3)

    # (B, 8, 128) -> (B, 1024): identical row-major layout, free reshape.
    g = g.reshape(B, C3)

    # ---- Stage 2: hoisted conv3 epilogue + fc1/fc2/fc3 on the whole batch ---
    Bfc = _choose_fc_tile(B)
    out = pl.pallas_call(
        _fc_kernel,
        out_shape=jax.ShapeDtypeStruct((B, k * k), jnp.float32),
        grid_spec=pltpu.PrefetchScalarGridSpec(
            num_scalar_prefetch=0,
            grid=(B // Bfc,),
            in_specs=[
                pl.BlockSpec((Bfc, C3), lambda b: (b, 0)),
                _const_spec(b3),
                _const_spec(wf1), _const_spec(bf1),
                _const_spec(wf2), _const_spec(bf2),
                _const_spec(wf3), _const_spec(bf3),
            ],
            out_specs=pl.BlockSpec((Bfc, k * k), lambda b: (b, 0)),
        ),
        compiler_params=pltpu.CompilerParams(
            dimension_semantics=("parallel",),
            vmem_limit_bytes=vmem_limit),
    )(g, b3, wf1, bf1, wf2, bf2, wf3, bf3)

    return out.reshape(B, k, k)


# ----------------------------------------------------------------------------
# Parameters (synthetic, deterministic) + BN folding + pure-JAX reference
# ----------------------------------------------------------------------------

def make_raw_params(key, k):
    """Synthetic parameters matching STNkd.__init__ shapes.

    Conv1d(Cin, Cout, 1) / Linear(Fin, Fout) weights are stored transposed as
    (Cin, Cout).  BN layers carry (gamma, beta, running_mean, running_var).
    """
    counter = [0]

    def nk():
        counter[0] += 1
        return jax.random.fold_in(key, counter[0])

    def layer(cin, cout, with_bn=True):
        W = 0.1 * jax.random.normal(nk(), (cin, cout), jnp.float32)
        b = 0.02 * jax.random.normal(nk(), (cout,), jnp.float32)
        if not with_bn:
            return (W, b, None)
        gamma = 1.0 + 0.05 * jax.random.normal(nk(), (cout,), jnp.float32)
        beta = 0.05 * jax.random.normal(nk(), (cout,), jnp.float32)
        mean = 0.1 * jax.random.normal(nk(), (cout,), jnp.float32)
        var = 1.0 + 0.1 * jax.random.uniform(nk(), (cout,), jnp.float32)
        return (W, b, (gamma, beta, mean, var))

    return {
        "conv1": layer(k, 64),
        "conv2": layer(64, 128),
        "conv3": layer(128, 1024),
        "fc1": layer(1024, 512),
        "fc2": layer(512, 256),
        "fc3": layer(256, k * k, with_bn=False),
    }


def fold_params(raw, k, use_bf16=True, eps=1e-5):
    """Fold eval-mode BN into weights/biases; fold identity into fc3 bias.

    y = ((x @ W + b) - mean) / sqrt(var + eps) * gamma + beta
      =  x @ (W * s) + ((b - mean) * s + beta),   s = gamma / sqrt(var + eps)
    """
    def fold(W, b, bn, cast=False):
        if bn is not None:
            gamma, beta, mean, var = bn
            s = gamma / jnp.sqrt(var + eps)
            W = W * s[None, :]
            b = (b - mean) * s + beta
        dt = jnp.bfloat16 if (cast and use_bf16) else jnp.float32
        return W.astype(dt), b.reshape(1, -1).astype(jnp.float32)

    w1, b1 = fold(*raw["conv1"])
    w2, b2 = fold(*raw["conv2"], cast=True)   # bf16 weights (MXU-native)
    w3, b3 = fold(*raw["conv3"], cast=True)
    wf1, bf1 = fold(*raw["fc1"], cast=True)
    wf2, bf2 = fold(*raw["fc2"])
    W3, b_fc3, _ = raw["fc3"]
    wf3 = W3.astype(jnp.float32)
    bf3 = (b_fc3 + jnp.eye(k, dtype=jnp.float32).flatten()).reshape(1, -1)
    return (w1, b1, w2, b2, w3, b3, wf1, bf1, wf2, bf2, wf3, bf3)


def stnkd_reference(x_bkn, raw, k, eps=1e-5):
    """Pure-JAX reference mirroring the PyTorch forward (eval-mode BN)."""
    def block(h, layer):
        W, b, bn = layer
        h = jnp.einsum("...c,cd->...d", h, W) + b
        gamma, beta, mean, var = bn
        h = (h - mean) / jnp.sqrt(var + eps) * gamma + beta
        return jnp.maximum(h, 0.0)

    x = jnp.transpose(x_bkn, (0, 2, 1))                 # (B, N, k)
    h = block(x, raw["conv1"])
    h = block(h, raw["conv2"])
    h = block(h, raw["conv3"])
    g = jnp.max(h, axis=1)                              # (B, 1024)
    f = block(g, raw["fc1"])
    f = block(f, raw["fc2"])
    W3, b3, _ = raw["fc3"]
    f = f @ W3 + b3 + jnp.eye(k, dtype=jnp.float32).flatten()
    return f.reshape(-1, k, k)


# ----------------------------------------------------------------------------
# Test
# ----------------------------------------------------------------------------

if __name__ == "__main__":
    key = jax.random.PRNGKey(0)
    k_param, k_in1, k_in2 = jax.random.split(key, 3)

    K = 3
    raw = make_raw_params(k_param, K)
    params = fold_params(raw, K, use_bf16=True)

    # Case 1: small shapes (B=2, k=3, N=16), single point tile.
    x1 = jax.random.normal(k_in1, (2, K, 16), jnp.float32)        # NCW
    out1 = jax.block_until_ready(stnkd_forward(x1, params, K))
    ref1 = stnkd_reference(x1, raw, K)
    assert out1.shape == (2, K, K)
    err1 = float(jnp.max(jnp.abs(out1 - ref1)))
    # conv2/conv3/fc1 run with bf16 weights (f32 accumulate) -> loose tolerance
    assert jnp.allclose(out1, ref1, atol=5e-2, rtol=5e-2), \
        f"case1 mismatch vs reference (max abs err {err1})"

    # Case 2: ragged point count (N=300 with a 64-point tile -> edge padding),
    # multiple point tiles (online max merge) and >= 2 parallel batch steps.
    x2 = jax.random.normal(k_in2, (4, K, 300), jnp.float32)       # NCW
    out2 = jax.block_until_ready(stnkd_forward(x2, params, K, point_tile=128))
    ref2 = stnkd_reference(x2, raw, K)
    assert out2.shape == (4, K, K)
    err2 = float(jnp.max(jnp.abs(out2 - ref2)))
    assert jnp.allclose(out2, ref2, atol=5e-2, rtol=5e-2), \
        f"case2 mismatch vs reference (max abs err {err2})"

    print("KERNEL_OK")
</pallas_src>

<mosaic_0001>
module attributes {stable_mosaic.version = 11 : i64} {
  func.func @_conv_pool_kernel(%arg0: i32, %arg1: i32, %arg2: memref<1x16x3xf32, #tpu.memory_space<vmem>>, %arg3: memref<3x64xf32, #tpu.memory_space<vmem>>, %arg4: memref<1x64xf32, #tpu.memory_space<vmem>>, %arg5: memref<64x128xbf16, #tpu.memory_space<vmem>>, %arg6: memref<1x128xf32, #tpu.memory_space<vmem>>, %arg7: memref<128x1024xbf16, #tpu.memory_space<vmem>>, %arg8: memref<1x8x128xf32, #tpu.memory_space<vmem>>) attributes {dimension_semantics = [#tpu.dimension_semantics<parallel>, #tpu.dimension_semantics<arbitrary>], iteration_bounds = array<i64: 2, 1>, scalar_prefetch = 0 : i64, scratch_operands = 0 : i64, tpu.core_type = #tpu.core_type<tc>, window_params = [{transform_indices = @transform_0, window_bounds = array<i64: 1, 16, 3>}, {pipeline_mode = #tpu.pipeline_mode<synchronous>, transform_indices = @transform_1, window_bounds = array<i64: 3, 64>}, {pipeline_mode = #tpu.pipeline_mode<synchronous>, transform_indices = @transform_2, window_bounds = array<i64: 1, 64>}, {pipeline_mode = #tpu.pipeline_mode<synchronous>, transform_indices = @transform_3, window_bounds = array<i64: 64, 128>}, {pipeline_mode = #tpu.pipeline_mode<synchronous>, transform_indices = @transform_4, window_bounds = array<i64: 1, 128>}, {pipeline_mode = #tpu.pipeline_mode<synchronous>, transform_indices = @transform_5, window_bounds = array<i64: 128, 1024>}, {transform_indices = @transform_6, window_bounds = array<i64: 1, 8, 128>}]} {
    %c0 = arith.constant 0 : index
    %c0_0 = arith.constant 0 : index
    %c0_1 = arith.constant 0 : index
    %0 = vector.load %arg2[%c0, %c0_0, %c0_1] : memref<1x16x3xf32, #tpu.memory_space<vmem>>, vector<1x16x3xf32>
    %1 = vector.shape_cast %0 : vector<1x16x3xf32> to vector<16x3xf32>
    %c0_2 = arith.constant 0 : index
    %c0_3 = arith.constant 0 : index
    %2 = vector.load %arg3[%c0_2, %c0_3] : memref<3x64xf32, #tpu.memory_space<vmem>>, vector<3x64xf32>
    %cst = arith.constant dense<0.000000e+00> : vector<16x64xf32>
    %3 = tpu.matmul %1, %2, %cst {dimension_numbers = #tpu.dot_dimension_numbers<[1], [0], [0], [1], [0, 0, 1, 1], [], []>} : vector<16x3xf32>, vector<3x64xf32>, vector<16x64xf32> -> vector<16x64xf32>
    %c0_4 = arith.constant 0 : index
    %c0_5 = arith.constant 0 : index
    %4 = vector.load %arg4[%c0_4, %c0_5] : memref<1x64xf32, #tpu.memory_space<vmem>>, vector<1x64xf32>
    %5 = vector.broadcast %4 : vector<1x64xf32> to vector<16x64xf32>
    %6 = arith.addf %3, %5 : vector<16x64xf32>
    %cst_6 = arith.constant 0.000000e+00 : f32
    %7 = vector.broadcast %cst_6 : f32 to vector<16x64xf32>
    %8 = arith.maximumf %6, %7 : vector<16x64xf32>
    %c0_7 = arith.constant 0 : index
    %c0_8 = arith.constant 0 : index
    %9 = vector.load %arg5[%c0_7, %c0_8] : memref<64x128xbf16, #tpu.memory_space<vmem>>, vector<64x128xbf16>
    %10 = arith.truncf %8 : vector<16x64xf32> to vector<16x64xbf16>
    %cst_9 = arith.constant dense<0.000000e+00> : vector<16x128xf32>
    %11 = tpu.matmul %10, %9, %cst_9 {dimension_numbers = #tpu.dot_dimension_numbers<[1], [0], [0], [1], [0, 0, 1, 1], [], []>} : vector<16x64xbf16>, vector<64x128xbf16>, vector<16x128xf32> -> vector<16x128xf32>
    %c0_10 = arith.constant 0 : index
    %c0_11 = arith.constant 0 : index
    %12 = vector.load %arg6[%c0_10, %c0_11] : memref<1x128xf32, #tpu.memory_space<vmem>>, vector<1x128xf32>
    %13 = vector.broadcast %12 : vector<1x128xf32> to vector<16x128xf32>
    %14 = arith.addf %11, %13 : vector<16x128xf32>
    %cst_12 = arith.constant 0.000000e+00 : f32
    %15 = vector.broadcast %cst_12 : f32 to vector<16x128xf32>
    %16 = arith.maximumf %14, %15 : vector<16x128xf32>
    %c0_13 = arith.constant 0 : index
    %c0_14 = arith.constant 0 : index
    %17 = vector.load %arg7[%c0_13, %c0_14] : memref<128x1024xbf16, #tpu.memory_space<vmem>>, vector<128x1024xbf16>
    %18 = arith.truncf %16 : vector<16x128xf32> to vector<16x128xbf16>
    %cst_15 = arith.constant dense<0.000000e+00> : vector<16x1024xf32>
    %19 = tpu.matmul %18, %17, %cst_15 {dimension_numbers = #tpu.dot_dimension_numbers<[1], [0], [0], [1], [0, 0, 1, 1], [], []>} : vector<16x128xbf16>, vector<128x1024xbf16>, vector<16x1024xf32> -> vector<16x1024xf32>
    %20 = vector.shape_cast %19 : vector<16x1024xf32> to vector<1x16x1024xf32>
    %cst_16 = arith.constant dense<0xFF800000> : vector<1x1024xf32>
    %21 = vector.multi_reduction <maximumf>, %20, %cst_16 [1] : vector<1x16x1024xf32> to vector<1x1024xf32>
    %22 = vector.shape_cast %21 : vector<1x1024xf32> to vector<1x8x128xf32>
    %c0_i32 = arith.constant 0 : i32
    %23 = arith.cmpi eq, %arg1, %c0_i32 : i32
    %24 = arith.extui %23 : i1 to i32
    %c0_i32_17 = arith.constant 0 : i32
    %25 = arith.cmpi ne, %24, %c0_i32_17 : i32
    scf.if %25 {
      %c0_20 = arith.constant 0 : index
      %c0_21 = arith.constant 0 : index
      %c0_22 = arith.constant 0 : index
      %29 = vector.load %arg8[%c0_20, %c0_21, %c0_22] : memref<1x8x128xf32, #tpu.memory_space<vmem>>, vector<1x8x128xf32>
      tpu.vector_store %arg8[%c0_20, %c0_21, %c0_22], %22 {strides = array<i32>} : memref<1x8x128xf32, #tpu.memory_space<vmem>>, vector<1x8x128xf32>,
    } else {
    }
    %c0_i32_18 = arith.constant 0 : i32
    %26 = arith.cmpi sgt, %arg1, %c0_i32_18 : i32
    %27 = arith.extui %26 : i1 to i32
    %c0_i32_19 = arith.constant 0 : i32
    %28 = arith.cmpi ne, %27, %c0_i32_19 : i32
    scf.if %28 {
      %c0_20 = arith.constant 0 : index
      %c0_21 = arith.constant 0 : index
      %c0_22 = arith.constant 0 : index
      %29 = vector.load %arg8[%c0_20, %c0_21, %c0_22] : memref<1x8x128xf32, #tpu.memory_space<vmem>>, vector<1x8x128xf32>
      %30 = arith.maximumf %29, %22 : vector<1x8x128xf32>
      %c0_23 = arith.constant 0 : index
      %c0_24 = arith.constant 0 : index
      %c0_25 = arith.constant 0 : index
      %31 = vector.load %arg8[%c0_23, %c0_24, %c0_25] : memref<1x8x128xf32, #tpu.memory_space<vmem>>, vector<1x8x128xf32>
      tpu.vector_store %arg8[%c0_23, %c0_24, %c0_25], %30 {strides = array<i32>} : memref<1x8x128xf32, #tpu.memory_space<vmem>>, vector<1x8x128xf32>,
    } else {
    }
    return
  }
  func.func @transform_0(%arg0: i32, %arg1: i32) -> (i32, i32, i32) {
    %c0_i32 = arith.constant 0 : i32
    %c0_i32_0 = arith.constant 0 : i32
    return %arg0, %arg1, %c0_i32 : i32, i32, i32
  }
  func.func @transform_1(%arg0: i32, %arg1: i32) -> (i32, i32) {
    %c0_i32 = arith.constant 0 : i32
    %c0_i32_0 = arith.constant 0 : i32
    %c0_i32_1 = arith.constant 0 : i32
    return %c0_i32, %c0_i32_0 : i32, i32
  }
  func.func @transform_2(%arg0: i32, %arg1: i32) -> (i32, i32) {
    %c0_i32 = arith.constant 0 : i32
    %c0_i32_0 = arith.constant 0 : i32
    %c0_i32_1 = arith.constant 0 : i32
    return %c0_i32, %c0_i32_0 : i32, i32
  }
  func.func @transform_3(%arg0: i32, %arg1: i32) -> (i32, i32) {
    %c0_i32 = arith.constant 0 : i32
    %c0_i32_0 = arith.constant 0 : i32
    %c0_i32_1 = arith.constant 0 : i32
    return %c0_i32, %c0_i32_0 : i32, i32
  }
  func.func @transform_4(%arg0: i32, %arg1: i32) -> (i32, i32) {
    %c0_i32 = arith.constant 0 : i32
    %c0_i32_0 = arith.constant 0 : i32
    %c0_i32_1 = arith.constant 0 : i32
    return %c0_i32, %c0_i32_0 : i32, i32
  }
  func.func @transform_5(%arg0: i32, %arg1: i32) -> (i32, i32) {
    %c0_i32 = arith.constant 0 : i32
    %c0_i32_0 = arith.constant 0 : i32
    %c0_i32_1 = arith.constant 0 : i32
    return %c0_i32, %c0_i32_0 : i32, i32
  }
  func.func @transform_6(%arg0: i32, %arg1: i32) -> (i32, i32, i32) {
    %c0_i32 = arith.constant 0 : i32
    %c0_i32_0 = arith.constant 0 : i32
    %c0_i32_1 = arith.constant 0 : i32
    return %arg0, %c0_i32, %c0_i32_0 : i32, i32, i32
  }
}

</mosaic_0001>

<llo_original>
// kernel: tpu_custom_call.1
$region0: #{tpu_custom_call.1}
  #allocation0 [shape = 'u32[]', space=smem, size = 0x4, offset = 0x4, fixed_abs, tag = 'smem constant byte address 0x4 - core index']
  #allocation1 [shape = 'u32[144,128]{1,0:T(1,128)}', space=vmem, size = 0x12000, scoped, tag = 'internal scratch']
  %s0 = inlined_call_operand.vmem [shape: f32[2,16,3], index: 0, kind: input, shape index: {}]
  %s1 = inlined_call_operand.vmem [shape: f32[3,64], index: 1, kind: input, shape index: {}]
  %s2 = inlined_call_operand.vmem [shape: f32[1,64], index: 2, kind: input, shape index: {}]
  %s3 = inlined_call_operand.vmem [shape: bf16[64,128], index: 3, kind: input, shape index: {}]
  %s4 = inlined_call_operand.vmem [shape: f32[1,128], index: 4, kind: input, shape index: {}]
  %s5 = inlined_call_operand.hbm [shape: bf16[128,1024], index: 5, kind: input, shape index: {}]
  %s6 = inlined_call_operand.hbm [shape: f32[2,8,128], index: 6, kind: output, shape index: {}]
  %s7 = sld [smem:[#allocation0]]
  $region69: #{tpu_custom_call.1} parent=0
    _
  %s9 = ssub.s32 1, %s7
  %s10 = scalar_select 0, %s9, %s7
  $region1: #{tpu_custom_call.1} parent=0
    #allocation2 [shape = 'u8[262144]{0}', space=vmem, size = 0x40000, scoped, tag = 'input window, operand 5, single buffered']
    #allocation3 [shape = 's32[2]{0}', space=sflag, size = 0x8, scoped, tag = 'scoped memory for tpu_custom_call.1']
    #allocation4 [shape = 's32[2]{0}', space=sflag, size = 0x8, scoped, tag = 'scoped memory for tpu_custom_call.1']
    #allocation5 [shape = 'u8[8192]{0}', space=vmem, size = 0x2000, scoped, tag = 'output window, operand 0']
    %11 = vsyncpa [#allocation3], 0
    %12 = vsyncpa [#allocation4], 0
    %s13 = scalar_lea.sflag [#allocation4], 1
    %14 = vsyncpa %s13, 0
    loop: start=0, step=1, limit=4
    $region2: #{tpu_custom_call.1} parent=1 // loop_pre_header
      _
    $region3: #{tpu_custom_call.1} parent=1 // loop_header
      %s16 = sphi 0, %s20
      %p17 = scmp.ge.s32.totalorder %s16, 4
      %s23 = sphi 0, %s35
      %s24 = sphi 0, %s31
      %s25 = sphi 0, %s23
      %s26 = sphi 0, %s24
      %s27 = sphi 0, %s25
      %s28 = sphi 0, %s26
      %s40 = sphi 0, %s42
      %s43 = sphi 0, %s40
      %s44 = sphi 0, %s43
      %s60 = sphi 0, %s44
      %s64 = sphi 0, %s64
      %s66 = sphi 0, %s64
      %s67 = sphi 0, %s66
      %s81 = sphi 0, %s67
      %s85 = sphi 0, %s85
      %s87 = sphi 0, %s85
      %s88 = sphi 0, %s87
      %s102 = sphi 0, %s88
      %s106 = sphi 0, %s106
      %s108 = sphi 0, %s106
      %s109 = sphi 0, %s108
      %s123 = sphi 0, %s109
      %s127 = sphi 0, %s127
      %s129 = sphi 0, %s127
      %s130 = sphi 0, %s129
      %s144 = sphi 0, %s130
      %s148 = sphi 0, %s148
      %s150 = sphi 0, %s148
      %s151 = sphi 0, %s150
      %s165 = sphi 0, %s151
      %s171 = sphi 0, %s173
      %s174 = sphi 0, %s171
      %s175 = sphi 0, %s174
      %s191 = sphi 0, %s175
    $region4: #{tpu_custom_call.1} parent=1 // loop_header_branch
      %19 = sbr.rel (%p17) target = $region8
    $region5: #{tpu_custom_call.1} parent=1 // loop_body
      %s21 = ssub.s32 %s16, 1
      %s22 = ssub.s32 %s16, 2
      %s29 = sadd.s32 1, %s24
      %p30 = scmp.ge.s32.totalorder %s29, 1
      %s31 = scalar_select %p30, 0, %s29
      %s32 = sadd.s32 1, %s23
      %s33 = scalar_select %p30, %s32, %s23
      %p34 = scmp.ge.s32.totalorder %s33, 2
      %s35 = scalar_select %p34, 0, %s33
      %s36 = ssub.s32 %s23, %s35
      %s37 = ssub.s32 %s24, %s31
      %s38 = sor.u32 %s36, %s37
      %p39 = scmp.eq.s32.totalorder %s38, 0
      %s41 = sadd.s32 %s40, 1
      %s42 = scalar_select %p39, %s40, %s41
      %p45 = pneg %p39
      %p46 = scmp.eq.s32.totalorder %s16, 1
      %p47 = por %p45, %p46
      %p48 = scmp.ne.s32.totalorder %s40, %s43
      %p49 = scmp.eq.s32.totalorder %s16, 0
      %p50 = por %p48, %p49
      %p51 = scmp.ne.s32.totalorder %s40, %s43
      %p52 = scmp.eq.s32.totalorder %s21, 1
      %p53 = por %p51, %p52
      %p54 = scmp.ne.s32.totalorder %s43, %s44
      %p55 = scmp.eq.s32.totalorder %s21, 0
      %p56 = por %p54, %p55
      %p57 = scmp.ne.s32.totalorder %s43, %s44
      %p58 = scmp.eq.s32.totalorder %s22, 1
      %p59 = por %p57, %p58
      %p61 = scmp.ne.s32.totalorder %s44, %s60
      %p62 = scmp.eq.s32.totalorder %s22, 0
      %p63 = por %p61, %p62
      %s65 = sadd.s32 %s64, 1
      %p68 = scmp.eq.s32.totalorder %s16, 1
      %p69 = scmp.ne.s32.totalorder %s64, %s66
      %p70 = scmp.eq.s32.totalorder %s16, 0
      %p71 = por %p69, %p70
      %p72 = scmp.ne.s32.totalorder %s64, %s66
      %p73 = scmp.eq.s32.totalorder %s21, 1
      %p74 = por %p72, %p73
      %p75 = scmp.ne.s32.totalorder %s66, %s67
      %p76 = scmp.eq.s32.totalorder %s21, 0
      %p77 = por %p75, %p76
      %p78 = scmp.ne.s32.totalorder %s66, %s67
      %p79 = scmp.eq.s32.totalorder %s22, 1
      %p80 = por %p78, %p79
      %p82 = scmp.ne.s32.totalorder %s67, %s81
      %p83 = scmp.eq.s32.totalorder %s22, 0
      %p84 = por %p82, %p83
      %s86 = sadd.s32 %s85, 1
      %p89 = scmp.eq.s32.totalorder %s16, 1
      %p90 = scmp.ne.s32.totalorder %s85, %s87
      %p91 = scmp.eq.s32.totalorder %s16, 0
      %p92 = por %p90, %p91
      %p93 = scmp.ne.s32.totalorder %s85, %s87
      %p94 = scmp.eq.s32.totalorder %s21, 1
      %p95 = por %p93, %p94
      %p96 = scmp.ne.s32.totalorder %s87, %s88
      %p97 = scmp.eq.s32.totalorder %s21, 0
      %p98 = por %p96, %p97
      %p99 = scmp.ne.s32.totalorder %s87, %s88
      %p100 = scmp.eq.s32.totalorder %s22, 1
      %p101 = por %p99, %p100
      %p103 = scmp.ne.s32.totalorder %s88, %s102
      %p104 = scmp.eq.s32.totalorder %s22, 0
      %p105 = por %p103, %p104
      %s107 = sadd.s32 %s106, 1
      %p110 = scmp.eq.s32.totalorder %s16, 1
      %p111 = scmp.ne.s32.totalorder %s106, %s108
      %p112 = scmp.eq.s32.totalorder %s16, 0
      %p113 = por %p111, %p112
      %p114 = scmp.ne.s32.totalorder %s106, %s108
      %p115 = scmp.eq.s32.totalorder %s21, 1
      %p116 = por %p114, %p115
      %p117 = scmp.ne.s32.totalorder %s108, %s109
      %p118 = scmp.eq.s32.totalorder %s21, 0
      %p119 = por %p117, %p118
      %p120 = scmp.ne.s32.totalorder %s108, %s109
      %p121 = scmp.eq.s32.totalorder %s22, 1
      %p122 = por %p120, %p121
      %p124 = scmp.ne.s32.totalorder %s109, %s123
      %p125 = scmp.eq.s32.totalorder %s22, 0
      %p126 = por %p124, %p125
      %s128 = sadd.s32 %s127, 1
      %p131 = scmp.eq.s32.totalorder %s16, 1
      %p132 = scmp.ne.s32.totalorder %s127, %s129
      %p133 = scmp.eq.s32.totalorder %s16, 0
      %p134 = por %p132, %p133
      %p135 = scmp.ne.s32.totalorder %s127, %s129
      %p136 = scmp.eq.s32.totalorder %s21, 1
      %p137 = por %p135, %p136
      %p138 = scmp.ne.s32.totalorder %s129, %s130
      %p139 = scmp.eq.s32.totalorder %s21, 0
      %p140 = por %p138, %p139
      %p141 = scmp.ne.s32.totalorder %s129, %s130
      %p142 = scmp.eq.s32.totalorder %s22, 1
      %p143 = por %p141, %p142
      %p145 = scmp.ne.s32.totalorder %s130, %s144
      %p146 = scmp.eq.s32.totalorder %s22, 0
      %p147 = por %p145, %p146
      %s149 = sadd.s32 %s148, 1
      %p152 = scmp.eq.s32.totalorder %s16, 1
      %p153 = scmp.ne.s32.totalorder %s148, %s150
      %p154 = scmp.eq.s32.totalorder %s16, 0
      %p155 = por %p153, %p154
      %p156 = scmp.ne.s32.totalorder %s148, %s150
      %p157 = scmp.eq.s32.totalorder %s21, 1
      %p158 = por %p156, %p157
      %p159 = scmp.ne.s32.totalorder %s150, %s151
      %p160 = scmp.eq.s32.totalorder %s21, 0
      %p161 = por %p159, %p160
      %p162 = scmp.ne.s32.totalorder %s150, %s151
      %p163 = scmp.eq.s32.totalorder %s22, 1
      %p164 = por %p162, %p163
      %p166 = scmp.ne.s32.totalorder %s151, %s165
      %p167 = scmp.eq.s32.totalorder %s22, 0
      %p168 = por %p166, %p167
      %s169 = ssub.s32 %s23, %s35
      %p170 = scmp.eq.s32.totalorder %s169, 0
      %s172 = sadd.s32 %s171, 1
      %s173 = scalar_select %p170, %s171, %s172
      %p176 = pneg %p170
      %p177 = scmp.eq.s32.totalorder %s16, 1
      %p178 = por %p176, %p177
      %p179 = scmp.ne.s32.totalorder %s171, %s174
      %p180 = scmp.eq.s32.totalorder %s16, 0
      %p181 = por %p179, %p180
      %p182 = scmp.ne.s32.totalorder %s171, %s174
      %p183 = scmp.eq.s32.totalorder %s21, 1
      %p184 = por %p182, %p183
      %p185 = scmp.ne.s32.totalorder %s174, %s175
      %p186 = scmp.eq.s32.totalorder %s21, 0
      %p187 = por %p185, %p186
      %p188 = scmp.ne.s32.totalorder %s174, %s175
      %p189 = scmp.eq.s32.totalorder %s22, 1
      %p190 = por %p188, %p189
      %p192 = scmp.ne.s32.totalorder %s175, %s191
      %p193 = scmp.eq.s32.totalorder %s22, 0
      %p194 = por %p192, %p193
      %p195 = scmp.le.s32.totalorder 1, %s16
      %p196 = scmp.lt.s32.totalorder %s16, 3
      %p197 = pnand %p195, %p196
      %p198 = pneg %p197
      // Predicated region
      $region9: #{tpu_custom_call.1} parent=5 // pred_check
        _
      $region10: #{tpu_custom_call.1} parent=5 // pred_check_branch
        %200 = sbr.rel (%p197) target = $region12
      $region11: #{tpu_custom_call.1} parent=5 // pred_region
        %s201 = ssub.s32 %s16, 1
        // Predicated region
        $region13: #{tpu_custom_call.1} parent=11 // pred_check
          %p202 = pneg %p77
        $region14: #{tpu_custom_call.1} parent=11 // pred_check_branch
          %204 = sbr.rel (%p202) target = $region16
        $region15: #{tpu_custom_call.1} parent=11 // pred_region
          _
        $region16: #{tpu_custom_call.1} parent=11 // pred_fallthru
          _
        // Predicated region
        $region17: #{tpu_custom_call.1} parent=11 // pred_check
          %p205 = pneg %p98
        $region18: #{tpu_custom_call.1} parent=11 // pred_check_branch
          %207 = sbr.rel (%p205) target = $region20
        $region19: #{tpu_custom_call.1} parent=11 // pred_region
          _
        $region20: #{tpu_custom_call.1} parent=11 // pred_fallthru
          _
        // Predicated region
        $region21: #{tpu_custom_call.1} parent=11 // pred_check
          %p208 = pneg %p119
        $region22: #{tpu_custom_call.1} parent=11 // pred_check_branch
          %210 = sbr.rel (%p208) target = $region24
        $region23: #{tpu_custom_call.1} parent=11 // pred_region
          _
        $region24: #{tpu_custom_call.1} parent=11 // pred_fallthru
          _
        // Predicated region
        $region25: #{tpu_custom_call.1} parent=11 // pred_check
          %p211 = pneg %p140
        $region26: #{tpu_custom_call.1} parent=11 // pred_check_branch
          %213 = sbr.rel (%p211) target = $region28
        $region27: #{tpu_custom_call.1} parent=11 // pred_region
          _
        $region28: #{tpu_custom_call.1} parent=11 // pred_fallthru
          _
        // Predicated region
        $region29: #{tpu_custom_call.1} parent=11 // pred_check
          %p214 = pneg %p161
        $region30: #{tpu_custom_call.1} parent=11 // pred_check_branch
          %216 = sbr.rel (%p214) target = $region32
        $region31: #{tpu_custom_call.1} parent=11 // pred_region
          %s218 = ssub.s32 8192, 8192
          %219 = vsyncadd [#allocation3], %s218
          %s220 = sshll.u32 [#allocation2], 4
          %s221 = int_to_ptr.vmem [resolvable:$true] %s220
          %226 = dma.hbm_to_vmem [thread:$0]  %s5, 8192, %s221, [#allocation3], 512, 512, 32
        $region32: #{tpu_custom_call.1} parent=11 // pred_fallthru
          _
      $region12: #{tpu_custom_call.1} parent=5 // pred_fallthru
        _
      %p227 = scmp.lt.s32.totalorder %s16, 2
      // Predicated region
      $region33: #{tpu_custom_call.1} parent=5 // pred_check
        %p228 = pneg %p227
      $region34: #{tpu_custom_call.1} parent=5 // pred_check_branch
        %230 = sbr.rel (%p228) target = $region36
      $region35: #{tpu_custom_call.1} parent=5 // pred_region
        // Predicated region
        $region37: #{tpu_custom_call.1} parent=35 // pred_check
          %p231 = pneg %p50
        $region38: #{tpu_custom_call.1} parent=35 // pred_check_branch
          %233 = sbr.rel (%p231) target = $region40
        $region39: #{tpu_custom_call.1} parent=35 // pred_region
          %s234 = smul.u32 2, %s24
          %p235 = scmp.lt.s32.totalorder %s23, 1
          %s236 = scalar_select %p235, %s23, 1
          %p237 = scmp.lt.s32.totalorder %s234, 1
          %s238 = scalar_select %p237, %s234, 1
          %s239 = smul.addr %s236, 2
          %s240 = sadd.s32 %s238, %s239
          %s241 = smul.addr %s240, 8
          %s242 = scalar_lea.vmem %s0, %s241
          %s243 = smul.u32 2, %s24
        $region40: #{tpu_custom_call.1} parent=35 // pred_fallthru
          _
      $region36: #{tpu_custom_call.1} parent=5 // pred_fallthru
        _
      %p244 = scmp.le.s32.totalorder 1, %s16
      %p245 = scmp.lt.s32.totalorder %s16, 3
      %p246 = pnand %p244, %p245
      %p247 = pneg %p246
      // Predicated region
      $region41: #{tpu_custom_call.1} parent=5 // pred_check
        _
      $region42: #{tpu_custom_call.1} parent=5 // pred_check_branch
        %249 = sbr.rel (%p246) target = $region44
      $region43: #{tpu_custom_call.1} parent=5 // pred_region
        %s250 = ssub.s32 %s16, 1
        // Predicated region
        $region45: #{tpu_custom_call.1} parent=43 // pred_check
          %p251 = pneg %p161
        $region46: #{tpu_custom_call.1} parent=43 // pred_check_branch
          %253 = sbr.rel (%p251) target = $region48
        $region47: #{tpu_custom_call.1} parent=43 // pred_region
          %254 = dma.done [#allocation3], 8192
        $region48: #{tpu_custom_call.1} parent=43 // pred_fallthru
          _
        %s255 = smul.u32 2, %s26
        %p256 = scmp.lt.s32.totalorder %s25, 1
        %s257 = scalar_select %p256, %s25, 1
        %p258 = scmp.lt.s32.totalorder %s255, 1
        %s259 = scalar_select %p258, %s255, 1
        %s260 = smul.addr %s257, 2
        %s261 = sadd.s32 %s259, %s260
        %s262 = smul.addr %s261, 8
        %s263 = scalar_lea.vmem %s0, %s262
        %p264 = pneg %p56
        %p265 = pneg %p53
        %p266 = pneg %p77
        %p267 = pneg %p74
        %p268 = pneg %p98
        %p269 = pneg %p95
        %p270 = pneg %p119
        %p271 = pneg %p116
        %p272 = pneg %p140
        %p273 = pneg %p137
        %p274 = pneg %p161
        %p275 = pneg %p158
        %p276 = pneg %p187
        %p277 = pneg %p184
        %s278 = sand.u32 %s174, 1
        %s279 = scalar_lea.sflag [#allocation4], %s278
        %s280 = sand.u32 %s174, 1
        %s281 = smul.addr %s280, 8
        %s282 = scalar_lea.vmem [#allocation5], %s281
        %s283 = smul.u32 2, %s26
        %p284 = scmp.lt.s32.totalorder %s25, 1
        %s285 = scalar_select %p284, %s25, 1
        %p286 = scmp.lt.s32.totalorder %s283, 1
        %s287 = scalar_select %p286, %s283, 1
        %s288 = smul.addr %s285, 2
        %s289 = sadd.s32 %s287, %s288
        %s290 = smul.addr %s289, 8
        %s291 = scalar_lea.vmem %s0, %s290
        %s292 = smul.u32 2, %s26
        %v294 = vld [vmem:[%s291] sm:$0xff]
        %v295 = vld [vmem:[%s291 + $0x8] sm:$0xff]
        %v296 = vld [vmem:[%s1] sm:$0x7]
        %v297 = vld [vmem:[%s2] sm:$0x1]
        %v299 = vlaneseq
        %v300 = vshrl.u32 %v299, 7
        %v301 = vsub.s32 0, %v300
        %v302 = vrot.slane %v297, %v301
        %vm304 = vcmask 23552
        %v306 = vsel %vm304, %v294, 0
        %v309 = vsel %vm304, %v295, 0
        %vm311 = vcmask 1042432
        %v313 = vsel %vm311, %v296, 0
        %315 = vmatprep.subr.mxu0 0.0
        %316 = vmatpush1.msra.mxu0 %v313
        %317 = vmatprep.subr.mxu0 0.0
        %318 = vmatpush1.msra.mxu0 0.0
        %319 = vmatprep.subr.mxu0 0.0
        %320 = vmatpush1.msra.mxu0 0.0
        %321 = vmatprep.subr.mxu0 0.0
        %322 = vmatpush1.msra.mxu0 0.0
        %323 = vmatprep.subr.mxu0 0.0
        %324 = vmatpush1.msra.mxu0 0.0
        %325 = vmatprep.subr.mxu0 0.0
        %326 = vmatpush1.msra.mxu0 0.0
        %327 = vmatprep.subr.mxu0 0.0
        %328 = vmatpush1.msra.mxu0 0.0
        %329 = vmatprep.subr.mxu0 0.0
        %330 = vmatpush1.msra.mxu0 0.0
        %331 = vmatprep.subr.mxu0 0.0
        %332 = vmatpush1.msra.mxu0 0.0
        %333 = vmatprep.subr.mxu0 0.0
        %334 = vmatpush1.msra.mxu0 0.0
        %335 = vmatprep.subr.mxu0 0.0
        %336 = vmatpush1.msra.mxu0 0.0
        %337 = vmatprep.subr.mxu0 0.0
        %338 = vmatpush1.msra.mxu0 0.0
        %339 = vmatprep.subr.mxu0 0.0
        %340 = vmatpush1.msra.mxu0 0.0
        %341 = vmatprep.subr.mxu0 0.0
        %342 = vmatpush1.msra.mxu0 0.0
        %343 = vmatprep.subr.mxu0 0.0
        %344 = vmatpush1.msra.mxu0 0.0
        %345 = vmatprep.subr.mxu0 0.0
        %346 = vmatpush1.msra.mxu0 0.0
        %347 = vmatprep.subr.mxu0 0.0
        %348 = vmatpush1.msra.mxu0 0.0
        %349 = vmatprep.subr.mxu0 0.0
        %350 = vmatpush1.msra.mxu0 0.0
        %351 = vmatprep.subr.mxu0 0.0
        %352 = vmatpush1.msra.mxu0 0.0
        %353 = vmatprep.subr.mxu0 0.0
        %354 = vmatpush1.msra.mxu0 0.0
        %355 = vmatprep.subr.mxu0 0.0
        %356 = vmatpush1.msra.mxu0 0.0
        %357 = vmatprep.subr.mxu0 0.0
        %358 = vmatpush1.msra.mxu0 0.0
        %359 = vmatprep.subr.mxu0 0.0
        %360 = vmatpush1.msra.mxu0 0.0
        %361 = vmatprep.subr.mxu0 0.0
        %362 = vmatpush1.msra.mxu0 0.0
        %363 = vmatprep.subr.mxu0 0.0
        %364 = vmatpush1.msra.mxu0 0.0
        %365 = vmatprep.subr.mxu0 0.0
        %366 = vmatpush1.msra.mxu0 0.0
        %367 = vmatprep.subr.mxu0 0.0
        %368 = vmatpush1.msra.mxu0 0.0
        %369 = vmatprep.subr.mxu0 0.0
        %370 = vmatpush1.msra.mxu0 0.0
        %371 = vmatprep.subr.mxu0 0.0
        %372 = vmatpush1.msra.mxu0 0.0
        %373 = vmatprep.subr.mxu0 0.0
        %374 = vmatpush1.msra.mxu0 0.0
        %375 = vmatprep.subr.mxu0 0.0
        %376 = vmatpush1.msra.mxu0 0.0
        %377 = vmatprep.subr.mxu0 0.0
        %378 = vmatpush1.msra.mxu0 0.0
        %379 = vmatprep.mubr.f32.mxu0 0.0
        %380 = vmatmul.mubr.f32.gmra.mrb[0].mxu0 %v306
        %v381 = vpop.f32.mrb[0].mxu0
        %v382 = vadd.f32 %v302, %v381
        %v383 = vpop.f32.mrb[0].mxu0
        %384 = vmatprep.mubr.f32.mxu0 0.0
        %385 = vmatmul.mubr.f32.gmra.mrb[0].mxu0 %v309
        %v386 = vpop.f32.mrb[0].mxu0
        %v387 = vadd.f32 %v302, %v386
        %v388 = vpop.f32.mrb[0].mxu0
        %389 = vdwg.mxu0
        %v390 = vmax.f32 %v382, 0.0
        %v391 = vmax.f32 %v387, 0.0
        %v392 = vld [vmem:[%s3] sm:$0xf]
        %v393 = vld [vmem:[%s3 + $0x4] sm:$0xf]
        %v394 = vld [vmem:[%s3 + $0x8] sm:$0xf]
        %v395 = vld [vmem:[%s3 + $0xc] sm:$0xf]
        %v396 = vld [vmem:[%s3 + $0x10] sm:$0xf]
        %v397 = vld [vmem:[%s3 + $0x14] sm:$0xf]
        %v398 = vld [vmem:[%s3 + $0x18] sm:$0xf]
        %v399 = vld [vmem:[%s3 + $0x1c] sm:$0xf]
        %v400 = vpack.c.bf16 %v391, %v390
        %v401 = vld [vmem:[%s4] sm:$0x1]
        %v403 = vlaneseq
        %v404 = vshrl.u32 %v403, 7
        %v405 = vsub.s32 0, %v404
        %v406 = vrot.slane %v401, %v405
        %v416 = vunpack.c.l.b16 %v392
        %v417 = vunpack.c.l.b16 %v393
        %v418 = vunpack.c.l.b16 %v394
        %v419 = vunpack.c.l.b16 %v395
        %v420 = vunpack.c.l.b16 %v396
        %v421 = vunpack.c.l.b16 %v397
        %v422 = vunpack.c.l.b16 %v398
        %v423 = vunpack.c.l.b16 %v399
        %v424 = vpack.c.b16 %v417, %v416
        %v425 = vpack.c.b16 %v419, %v418
        %v426 = vpack.c.b16 %v421, %v420
        %v427 = vpack.c.b16 %v423, %v422
        %vm432 = vcmask 523264
        %v434 = vsel %vm432, %v400, 0
        %436 = vmatprep.subr.bf16.mxu0 0
        %437 = vmatpush1.bf16.msra.mxu0 %v424
        %438 = vmatprep.subr.bf16.mxu0 0
        %439 = vmatpush1.bf16.msra.mxu0 %v425
        %440 = vmatprep.subr.bf16.mxu0 0
        %441 = vmatpush1.bf16.msra.mxu0 %v426
        %442 = vmatprep.subr.bf16.mxu0 0
        %443 = vmatpush1.bf16.msra.mxu0 %v427
        %444 = vmatprep.subr.bf16.mxu0 0
        %445 = vmatpush1.bf16.msra.mxu0 0
        %446 = vmatprep.subr.bf16.mxu0 0
        %447 = vmatpush1.bf16.msra.mxu0 0
        %448 = vmatprep.subr.bf16.mxu0 0
        %449 = vmatpush1.bf16.msra.mxu0 0
        %450 = vmatprep.subr.bf16.mxu0 0
        %451 = vmatpush1.bf16.msra.mxu0 0
        %452 = vmatprep.subr.bf16.mxu0 0
        %453 = vmatpush1.bf16.msra.mxu0 0
        %454 = vmatprep.subr.bf16.mxu0 0
        %455 = vmatpush1.bf16.msra.mxu0 0
        %456 = vmatprep.subr.bf16.mxu0 0
        %457 = vmatpush1.bf16.msra.mxu0 0
        %458 = vmatprep.subr.bf16.mxu0 0
        %459 = vmatpush1.bf16.msra.mxu0 0
        %460 = vmatprep.subr.bf16.mxu0 0
        %461 = vmatpush1.bf16.msra.mxu0 0
        %462 = vmatprep.subr.bf16.mxu0 0
        %463 = vmatpush1.bf16.msra.mxu0 0
        %464 = vmatprep.subr.bf16.mxu0 0
        %465 = vmatpush1.bf16.msra.mxu0 0
        %466 = vmatprep.subr.bf16.mxu0 0
        %467 = vmatpush1.bf16.msra.mxu0 0
        %468 = vmatprep.mubr.bf16.mxu0 0
        %469 = vmatmul.mubr.bf16.gmra.mrb[0].mxu0 %v434
        %v470 = vpop.f32.mrb[0].mxu0
        %v471 = vadd.f32 %v406, %v470
        %v472 = vpop.f32.mrb[0].mxu0
        %v473 = vpop.f32.mrb[0].mxu0
        %v474 = vadd.f32 %v406, %v473
        %v475 = vpop.f32.mrb[0].mxu0
        %476 = vdwg.mxu0
        %v477 = vmax.f32 %v471, 0.0
        %v478 = vmax.f32 %v474, 0.0
        %v479 = vld [vmem:[#allocation2] sm:$0xff]
        %v480 = vld [vmem:[#allocation2 + $0x8] sm:$0xff]
        %v481 = vld [vmem:[#allocation2 + $0x10] sm:$0xff]
        %v482 = vld [vmem:[#allocation2 + $0x18] sm:$0xff]
        %v483 = vld [vmem:[#allocation2 + $0x20] sm:$0xff]
        %v484 = vld [vmem:[#allocation2 + $0x28] sm:$0xff]
        %v485 = vld [vmem:[#allocation2 + $0x30] sm:$0xff]
        %v486 = vld [vmem:[#allocation2 + $0x38] sm:$0xff]
        %v487 = vld [vmem:[#allocation2 + $0x40] sm:$0xff]
        %v488 = vld [vmem:[#allocation2 + $0x48] sm:$0xff]
        %v489 = vld [vmem:[#allocation2 + $0x50] sm:$0xff]
        %v490 = vld [vmem:[#allocation2 + $0x58] sm:$0xff]
        %v491 = vld [vmem:[#allocation2 + $0x60] sm:$0xff]
        %v492 = vld [vmem:[#allocation2 + $0x68] sm:$0xff]
        %v493 = vld [vmem:[#allocation2 + $0x70] sm:$0xff]
        %v494 = vld [vmem:[#allocation2 + $0x78] sm:$0xff]
        %v495 = vld [vmem:[#allocation2 + $0x80] sm:$0xff]
        %v496 = vld [vmem:[#allocation2 + $0x88] sm:$0xff]
        %v497 = vld [vmem:[#allocation2 + $0x90] sm:$0xff]
        %v498 = vld [vmem:[#allocation2 + $0x98] sm:$0xff]
        %v499 = vld [vmem:[#allocation2 + $0xa0] sm:$0xff]
        %v500 = vld [vmem:[#allocation2 + $0xa8] sm:$0xff]
        %v501 = vld [vmem:[#allocation2 + $0xb0] sm:$0xff]
        %v502 = vld [vmem:[#allocation2 + $0xb8] sm:$0xff]
        %v503 = vld [vmem:[#allocation2 + $0xc0] sm:$0xff]
        %v504 = vld [vmem:[#allocation2 + $0xc8] sm:$0xff]
        %v505 = vld [vmem:[#allocation2 + $0xd0] sm:$0xff]
        %v506 = vld [vmem:[#allocation2 + $0xd8] sm:$0xff]
        %v507 = vld [vmem:[#allocation2 + $0xe0] sm:$0xff]
        %v508 = vld [vmem:[#allocation2 + $0xe8] sm:$0xff]
        %v509 = vld [vmem:[#allocation2 + $0xf0] sm:$0xff]
        %v510 = vld [vmem:[#allocation2 + $0xf8] sm:$0xff]
        %v511 = vld [vmem:[#allocation2 + $0x100] sm:$0xff]
        %v512 = vld [vmem:[#allocation2 + $0x108] sm:$0xff]
        %v513 = vld [vmem:[#allocation2 + $0x110] sm:$0xff]
        %v514 = vld [vmem:[#allocation2 + $0x118] sm:$0xff]
        %v515 = vld [vmem:[#allocation2 + $0x120] sm:$0xff]
        %v516 = vld [vmem:[#allocation2 + $0x128] sm:$0xff]
        %v517 = vld [vmem:[#allocation2 + $0x130] sm:$0xff]
        %v518 = vld [vmem:[#allocation2 + $0x138] sm:$0xff]
        %v519 = vld [vmem:[#allocation2 + $0x140] sm:$0xff]
        %v520 = vld [vmem:[#allocation2 + $0x148] sm:$0xff]
        %v521 = vld [vmem:[#allocation2 + $0x150] sm:$0xff]
        %v522 = vld [vmem:[#allocation2 + $0x158] sm:$0xff]
        %v523 = vld [vmem:[#allocation2 + $0x160] sm:$0xff]
        %v524 = vld [vmem:[#allocation2 + $0x168] sm:$0xff]
        %v525 = vld [vmem:[#allocation2 + $0x170] sm:$0xff]
        %v526 = vld [vmem:[#allocation2 + $0x178] sm:$0xff]
        %v527 = vld [vmem:[#allocation2 + $0x180] sm:$0xff]
        %v528 = vld [vmem:[#allocation2 + $0x188] sm:$0xff]
        %v529 = vld [vmem:[#allocation2 + $0x190] sm:$0xff]
        %v530 = vld [vmem:[#allocation2 + $0x198] sm:$0xff]
        %v531 = vld [vmem:[#allocation2 + $0x1a0] sm:$0xff]
        %v532 = vld [vmem:[#allocation2 + $0x1a8] sm:$0xff]
        %v533 = vld [vmem:[#allocation2 + $0x1b0] sm:$0xff]
        %v534 = vld [vmem:[#allocation2 + $0x1b8] sm:$0xff]
        %v535 = vld [vmem:[#allocation2 + $0x1c0] sm:$0xff]
        %v536 = vld [vmem:[#allocation2 + $0x1c8] sm:$0xff]
        %v537 = vld [vmem:[#allocation2 + $0x1d0] sm:$0xff]
        %v538 = vld [vmem:[#allocation2 + $0x1d8] sm:$0xff]
        %v539 = vld [vmem:[#allocation2 + $0x1e0] sm:$0xff]
        %v540 = vld [vmem:[#allocation2 + $0x1e8] sm:$0xff]
        %v541 = vld [vmem:[#allocation2 + $0x1f0] sm:$0xff]
        %v542 = vld [vmem:[#allocation2 + $0x1f8] sm:$0xff]
        %v543 = vpack.c.bf16 %v478, %v477
        %v608 = vunpack.c.l.b16 %v479
        %v609 = vunpack.c.h.b16 %v479
        %v610 = vunpack.c.l.b16 %v480
        %v611 = vunpack.c.h.b16 %v480
        %v612 = vunpack.c.l.b16 %v481
        %v613 = vunpack.c.h.b16 %v481
        %v614 = vunpack.c.l.b16 %v482
        %v615 = vunpack.c.h.b16 %v482
        %v616 = vunpack.c.l.b16 %v483
        %v617 = vunpack.c.h.b16 %v483
        %v618 = vunpack.c.l.b16 %v484
        %v619 = vunpack.c.h.b16 %v484
        %v620 = vunpack.c.l.b16 %v485
        %v621 = vunpack.c.h.b16 %v485
        %v622 = vunpack.c.l.b16 %v486
        %v623 = vunpack.c.h.b16 %v486
        %v624 = vunpack.c.l.b16 %v487
        %v625 = vunpack.c.h.b16 %v487
        %v626 = vunpack.c.l.b16 %v488
        %v627 = vunpack.c.h.b16 %v488
        %v628 = vunpack.c.l.b16 %v489
        %v629 = vunpack.c.h.b16 %v489
        %v630 = vunpack.c.l.b16 %v490
        %v631 = vunpack.c.h.b16 %v490
        %v632 = vunpack.c.l.b16 %v491
        %v633 = vunpack.c.h.b16 %v491
        %v634 = vunpack.c.l.b16 %v492
        %v635 = vunpack.c.h.b16 %v492
        %v636 = vunpack.c.l.b16 %v493
        %v637 = vunpack.c.h.b16 %v493
        %v638 = vunpack.c.l.b16 %v494
        %v639 = vunpack.c.h.b16 %v494
        %v640 = vunpack.c.l.b16 %v495
        %v641 = vunpack.c.h.b16 %v495
        %v642 = vunpack.c.l.b16 %v496
        %v643 = vunpack.c.h.b16 %v496
        %v644 = vunpack.c.l.b16 %v497
        %v645 = vunpack.c.h.b16 %v497
        %v646 = vunpack.c.l.b16 %v498
        %v647 = vunpack.c.h.b16 %v498
        %v648 = vunpack.c.l.b16 %v499
        %v649 = vunpack.c.h.b16 %v499
        %v650 = vunpack.c.l.b16 %v500
        %v651 = vunpack.c.h.b16 %v500
        %v652 = vunpack.c.l.b16 %v501
        %v653 = vunpack.c.h.b16 %v501
        %v654 = vunpack.c.l.b16 %v502
        %v655 = vunpack.c.h.b16 %v502
        %v656 = vunpack.c.l.b16 %v503
        %v657 = vunpack.c.h.b16 %v503
        %v658 = vunpack.c.l.b16 %v504
        %v659 = vunpack.c.h.b16 %v504
        %v660 = vunpack.c.l.b16 %v505
        %v661 = vunpack.c.h.b16 %v505
        %v662 = vunpack.c.l.b16 %v506
        %v663 = vunpack.c.h.b16 %v506
        %v664 = vunpack.c.l.b16 %v507
        %v665 = vunpack.c.h.b16 %v507
        %v666 = vunpack.c.l.b16 %v508
        %v667 = vunpack.c.h.b16 %v508
        %v668 = vunpack.c.l.b16 %v509
        %v669 = vunpack.c.h.b16 %v509
        %v670 = vunpack.c.l.b16 %v510
        %v671 = vunpack.c.h.b16 %v510
        %v672 = vunpack.c.l.b16 %v511
        %v673 = vunpack.c.h.b16 %v511
        %v674 = vunpack.c.l.b16 %v512
        %v675 = vunpack.c.h.b16 %v512
        %v676 = vunpack.c.l.b16 %v513
        %v677 = vunpack.c.h.b16 %v513
        %v678 = vunpack.c.l.b16 %v514
        %v679 = vunpack.c.h.b16 %v514
        %v680 = vunpack.c.l.b16 %v515
        %v681 = vunpack.c.h.b16 %v515
        %v682 = vunpack.c.l.b16 %v516
        %v683 = vunpack.c.h.b16 %v516
        %v684 = vunpack.c.l.b16 %v517
        %v685 = vunpack.c.h.b16 %v517
        %v686 = vunpack.c.l.b16 %v518
        %v687 = vunpack.c.h.b16 %v518
        %v688 = vunpack.c.l.b16 %v519
        %v689 = vunpack.c.h.b16 %v519
        %v690 = vunpack.c.l.b16 %v520
        %v691 = vunpack.c.h.b16 %v520
        %v692 = vunpack.c.l.b16 %v521
        %v693 = vunpack.c.h.b16 %v521
        %v694 = vunpack.c.l.b16 %v522
        %v695 = vunpack.c.h.b16 %v522
        %v696 = vunpack.c.l.b16 %v523
        %v697 = vunpack.c.h.b16 %v523
        %v698 = vunpack.c.l.b16 %v524
        %v699 = vunpack.c.h.b16 %v524
        %v700 = vunpack.c.l.b16 %v525
        %v701 = vunpack.c.h.b16 %v525
        %v702 = vunpack.c.l.b16 %v526
        %v703 = vunpack.c.h.b16 %v526
        %v704 = vunpack.c.l.b16 %v527
        %v705 = vunpack.c.h.b16 %v527
        %v706 = vunpack.c.l.b16 %v528
        %v707 = vunpack.c.h.b16 %v528
        %v708 = vunpack.c.l.b16 %v529
        %v709 = vunpack.c.h.b16 %v529
        %v710 = vunpack.c.l.b16 %v530
        %v711 = vunpack.c.h.b16 %v530
        %v712 = vunpack.c.l.b16 %v531
        %v713 = vunpack.c.h.b16 %v531
        %v714 = vunpack.c.l.b16 %v532
        %v715 = vunpack.c.h.b16 %v532
        %v716 = vunpack.c.l.b16 %v533
        %v717 = vunpack.c.h.b16 %v533
        %v718 = vunpack.c.l.b16 %v534
        %v719 = vunpack.c.h.b16 %v534
        %v720 = vunpack.c.l.b16 %v535
        %v721 = vunpack.c.h.b16 %v535
        %v722 = vunpack.c.l.b16 %v536
        %v723 = vunpack.c.h.b16 %v536
        %v724 = vunpack.c.l.b16 %v537
        %v725 = vunpack.c.h.b16 %v537
        %v726 = vunpack.c.l.b16 %v538
        %v727 = vunpack.c.h.b16 %v538
        %v728 = vunpack.c.l.b16 %v539
        %v729 = vunpack.c.h.b16 %v539
        %v730 = vunpack.c.l.b16 %v540
        %v731 = vunpack.c.h.b16 %v540
        %v732 = vunpack.c.l.b16 %v541
        %v733 = vunpack.c.h.b16 %v541
        %v734 = vunpack.c.l.b16 %v542
        %v735 = vunpack.c.h.b16 %v542
        %v736 = vpack.c.b16 %v616, %v608
        %v737 = vpack.c.b16 %v617, %v609
        %v738 = vpack.c.b16 %v618, %v610
        %v739 = vpack.c.b16 %v619, %v611
        %v740 = vpack.c.b16 %v620, %v612
        %v741 = vpack.c.b16 %v621, %v613
        %v742 = vpack.c.b16 %v622, %v614
        %v743 = vpack.c.b16 %v623, %v615
        %v744 = vpack.c.b16 %v632, %v624
        %v745 = vpack.c.b16 %v633, %v625
        %v746 = vpack.c.b16 %v634, %v626
        %v747 = vpack.c.b16 %v635, %v627
        %v748 = vpack.c.b16 %v636, %v628
        %v749 = vpack.c.b16 %v637, %v629
        %v750 = vpack.c.b16 %v638, %v630
        %v751 = vpack.c.b16 %v639, %v631
        %v752 = vpack.c.b16 %v648, %v640
        %v753 = vpack.c.b16 %v649, %v641
        %v754 = vpack.c.b16 %v650, %v642
        %v755 = vpack.c.b16 %v651, %v643
        %v756 = vpack.c.b16 %v652, %v644
        %v757 = vpack.c.b16 %v653, %v645
        %v758 = vpack.c.b16 %v654, %v646
        %v759 = vpack.c.b16 %v655, %v647
        %v760 = vpack.c.b16 %v664, %v656
        %v761 = vpack.c.b16 %v665, %v657
        %v762 = vpack.c.b16 %v666, %v658
        %v763 = vpack.c.b16 %v667, %v659
        %v764 = vpack.c.b16 %v668, %v660
        %v765 = vpack.c.b16 %v669, %v661
        %v766 = vpack.c.b16 %v670, %v662
        %v767 = vpack.c.b16 %v671, %v663
        %v768 = vpack.c.b16 %v680, %v672
        %v769 = vpack.c.b16 %v681, %v673
        %v770 = vpack.c.b16 %v682, %v674
        %v771 = vpack.c.b16 %v683, %v675
        %v772 = vpack.c.b16 %v684, %v676
        %v773 = vpack.c.b16 %v685, %v677
        %v774 = vpack.c.b16 %v686, %v678
        %v775 = vpack.c.b16 %v687, %v679
        %v776 = vpack.c.b16 %v696, %v688
        %v777 = vpack.c.b16 %v697, %v689
        %v778 = vpack.c.b16 %v698, %v690
        %v779 = vpack.c.b16 %v699, %v691
        %v780 = vpack.c.b16 %v700, %v692
        %v781 = vpack.c.b16 %v701, %v693
        %v782 = vpack.c.b16 %v702, %v694
        %v783 = vpack.c.b16 %v703, %v695
        %v784 = vpack.c.b16 %v712, %v704
        %v785 = vpack.c.b16 %v713, %v705
        %v786 = vpack.c.b16 %v714, %v706
        %v787 = vpack.c.b16 %v715, %v707
        %v788 = vpack.c.b16 %v716, %v708
        %v789 = vpack.c.b16 %v717, %v709
        %v790 = vpack.c.b16 %v718, %v710
        %v791 = vpack.c.b16 %v719, %v711
        %v792 = vpack.c.b16 %v728, %v720
        %v793 = vpack.c.b16 %v729, %v721
        %v794 = vpack.c.b16 %v730, %v722
        %v795 = vpack.c.b16 %v731, %v723
        %v796 = vpack.c.b16 %v732, %v724
        %v797 = vpack.c.b16 %v733, %v725
        %v798 = vpack.c.b16 %v734, %v726
        %v799 = vpack.c.b16 %v735, %v727
        %864 = vmatprep.subr.bf16.mxu0 %v737
        %865 = vmatpush1.bf16.msra.mxu0 %v736
        %866 = vmatprep.subr.bf16.mxu0 %v745
        %867 = vmatpush1.bf16.msra.mxu0 %v744
        %868 = vmatprep.subr.bf16.mxu0 %v753
        %869 = vmatpush1.bf16.msra.mxu0 %v752
        %870 = vmatprep.subr.bf16.mxu0 %v761
        %871 = vmatpush1.bf16.msra.mxu0 %v760
        %872 = vmatprep.subr.bf16.mxu0 %v769
        %873 = vmatpush1.bf16.msra.mxu0 %v768
        %874 = vmatprep.subr.bf16.mxu0 %v777
        %875 = vmatpush1.bf16.msra.mxu0 %v776
        %876 = vmatprep.subr.bf16.mxu0 %v785
        %877 = vmatpush1.bf16.msra.mxu0 %v784
        %878 = vmatprep.subr.bf16.mxu0 %v793
        %879 = vmatpush1.bf16.msra.mxu0 %v792
        %880 = vmatprep.subr.bf16.mxu0 0
        %881 = vmatpush1.bf16.msra.mxu0 0
        %882 = vmatprep.subr.bf16.mxu0 0
        %883 = vmatpush1.bf16.msra.mxu0 0
        %884 = vmatprep.subr.bf16.mxu0 0
        %885 = vmatpush1.bf16.msra.mxu0 0
        %886 = vmatprep.subr.bf16.mxu0 0
        %887 = vmatpush1.bf16.msra.mxu0 0
        %888 = vmatprep.subr.bf16.mxu0 0
        %889 = vmatpush1.bf16.msra.mxu0 0
        %890 = vmatprep.subr.bf16.mxu0 0
        %891 = vmatpush1.bf16.msra.mxu0 0
        %892 = vmatprep.subr.bf16.mxu0 0
        %893 = vmatpush1.bf16.msra.mxu0 0
        %894 = vmatprep.subr.bf16.mxu0 0
        %895 = vmatpush1.bf16.msra.mxu0 0
        %896 = vmatprep.mubr.bf16.mxu0 0
        %897 = vmatmul.mubr.bf16.gmra.mrb[0].mxu0 %v543
        %v898 = vpop.f32.mrb[0].mxu0
        %v899 = vadd.f32 0.0, %v898
        %v900 = vpop.f32.mrb[0].mxu0
        %v901 = vadd.f32 0.0, %v900
        %v902 = vpop.f32.mrb[0].mxu0
        %v903 = vadd.f32 0.0, %v902
        %v904 = vpop.f32.mrb[0].mxu0
        %v905 = vadd.f32 0.0, %v904
        %906 = vdwg.mxu0
        %907 = vmatprep.subr.bf16.mxu0 %v739
        %908 = vmatpush1.bf16.msra.mxu0 %v738
        %909 = vmatprep.subr.bf16.mxu0 %v747
        %910 = vmatpush1.bf16.msra.mxu0 %v746
        %911 = vmatprep.subr.bf16.mxu0 %v755
        %912 = vmatpush1.bf16.msra.mxu0 %v754
        %913 = vmatprep.subr.bf16.mxu0 %v763
        %914 = vmatpush1.bf16.msra.mxu0 %v762
        %915 = vmatprep.subr.bf16.mxu0 %v771
        %916 = vmatpush1.bf16.msra.mxu0 %v770
        %917 = vmatprep.subr.bf16.mxu0 %v779
        %918 = vmatpush1.bf16.msra.mxu0 %v778
        %919 = vmatprep.subr.bf16.mxu0 %v787
        %920 = vmatpush1.bf16.msra.mxu0 %v786
        %921 = vmatprep.subr.bf16.mxu0 %v795
        %922 = vmatpush1.bf16.msra.mxu0 %v794
        %923 = vmatprep.subr.bf16.mxu0 0
        %924 = vmatpush1.bf16.msra.mxu0 0
        %925 = vmatprep.subr.bf16.mxu0 0
        %926 = vmatpush1.bf16.msra.mxu0 0
        %927 = vmatprep.subr.bf16.mxu0 0
        %928 = vmatpush1.bf16.msra.mxu0 0
        %929 = vmatprep.subr.bf16.mxu0 0
        %930 = vmatpush1.bf16.msra.mxu0 0
        %931 = vmatprep.subr.bf16.mxu0 0
        %932 = vmatpush1.bf16.msra.mxu0 0
        %933 = vmatprep.subr.bf16.mxu0 0
        %934 = vmatpush1.bf16.msra.mxu0 0
        %935 = vmatprep.subr.bf16.mxu0 0
        %936 = vmatpush1.bf16.msra.mxu0 0
        %937 = vmatprep.subr.bf16.mxu0 0
        %938 = vmatpush1.bf16.msra.mxu0 0
        %939 = vmatprep.mubr.bf16.mxu0 0
        %940 = vmatmul.mubr.bf16.gmra.mrb[0].mxu0 %v543
        %v941 = vpop.f32.mrb[0].mxu0
        %v942 = vadd.f32 0.0, %v941
        %v943 = vpop.f32.mrb[0].mxu0
        %v944 = vadd.f32 0.0, %v943
        %v945 = vpop.f32.mrb[0].mxu0
        %v946 = vadd.f32 0.0, %v945
        %v947 = vpop.f32.mrb[0].mxu0
        %v948 = vadd.f32 0.0, %v947
        %949 = vdwg.mxu0
        %950 = vmatprep.subr.bf16.mxu0 %v741
        %951 = vmatpush1.bf16.msra.mxu0 %v740
        %952 = vmatprep.subr.bf16.mxu0 %v749
        %953 = vmatpush1.bf16.msra.mxu0 %v748
        %954 = vmatprep.subr.bf16.mxu0 %v757
        %955 = vmatpush1.bf16.msra.mxu0 %v756
        %956 = vmatprep.subr.bf16.mxu0 %v765
        %957 = vmatpush1.bf16.msra.mxu0 %v764
        %958 = vmatprep.subr.bf16.mxu0 %v773
        %959 = vmatpush1.bf16.msra.mxu0 %v772
        %960 = vmatprep.subr.bf16.mxu0 %v781
        %961 = vmatpush1.bf16.msra.mxu0 %v780
        %962 = vmatprep.subr.bf16.mxu0 %v789
        %963 = vmatpush1.bf16.msra.mxu0 %v788
        %964 = vmatprep.subr.bf16.mxu0 %v797
        %965 = vmatpush1.bf16.msra.mxu0 %v796
        %966 = vmatprep.subr.bf16.mxu0 0
        %967 = vmatpush1.bf16.msra.mxu0 0
        %968 = vmatprep.subr.bf16.mxu0 0
        %969 = vmatpush1.bf16.msra.mxu0 0
        %970 = vmatprep.subr.bf16.mxu0 0
        %971 = vmatpush1.bf16.msra.mxu0 0
        %972 = vmatprep.subr.bf16.mxu0 0
        %973 = vmatpush1.bf16.msra.mxu0 0
        %974 = vmatprep.subr.bf16.mxu0 0
        %975 = vmatpush1.bf16.msra.mxu0 0
        %976 = vmatprep.subr.bf16.mxu0 0
        %977 = vmatpush1.bf16.msra.mxu0 0
        %978 = vmatprep.subr.bf16.mxu0 0
        %979 = vmatpush1.bf16.msra.mxu0 0
        %980 = vmatprep.subr.bf16.mxu0 0
        %981 = vmatpush1.bf16.msra.mxu0 0
        %982 = vmatprep.mubr.bf16.mxu0 0
        %983 = vmatmul.mubr.bf16.gmra.mrb[0].mxu0 %v543
        %v984 = vpop.f32.mrb[0].mxu0
        %v985 = vadd.f32 0.0, %v984
        %v986 = vpop.f32.mrb[0].mxu0
        %v987 = vadd.f32 0.0, %v986
        %v988 = vpop.f32.mrb[0].mxu0
        %v989 = vadd.f32 0.0, %v988
        %v990 = vpop.f32.mrb[0].mxu0
        %v991 = vadd.f32 0.0, %v990
        %992 = vdwg.mxu0
        %993 = vmatprep.subr.bf16.mxu0 %v743
        %994 = vmatpush1.bf16.msra.mxu0 %v742
        %995 = vmatprep.subr.bf16.mxu0 %v751
        %996 = vmatpush1.bf16.msra.mxu0 %v750
        %997 = vmatprep.subr.bf16.mxu0 %v759
        %998 = vmatpush1.bf16.msra.mxu0 %v758
        %999 = vmatprep.subr.bf16.mxu0 %v767
        %1000 = vmatpush1.bf16.msra.mxu0 %v766
        %1001 = vmatprep.subr.bf16.mxu0 %v775
        %1002 = vmatpush1.bf16.msra.mxu0 %v774
        %1003 = vmatprep.subr.bf16.mxu0 %v783
        %1004 = vmatpush1.bf16.msra.mxu0 %v782
        %1005 = vmatprep.subr.bf16.mxu0 %v791
        %1006 = vmatpush1.bf16.msra.mxu0 %v790
        %1007 = vmatprep.subr.bf16.mxu0 %v799
        %1008 = vmatpush1.bf16.msra.mxu0 %v798
        %1009 = vmatprep.subr.bf16.mxu0 0
        %1010 = vmatpush1.bf16.msra.mxu0 0
        %1011 = vmatprep.subr.bf16.mxu0 0
        %1012 = vmatpush1.bf16.msra.mxu0 0
        %1013 = vmatprep.subr.bf16.mxu0 0
        %1014 = vmatpush1.bf16.msra.mxu0 0
        %1015 = vmatprep.subr.bf16.mxu0 0
        %1016 = vmatpush1.bf16.msra.mxu0 0
        %1017 = vmatprep.subr.bf16.mxu0 0
        %1018 = vmatpush1.bf16.msra.mxu0 0
        %1019 = vmatprep.subr.bf16.mxu0 0
        %1020 = vmatpush1.bf16.msra.mxu0 0
        %1021 = vmatprep.subr.bf16.mxu0 0
        %1022 = vmatpush1.bf16.msra.mxu0 0
        %1023 = vmatprep.subr.bf16.mxu0 0
        %1024 = vmatpush1.bf16.msra.mxu0 0
        %1025 = vmatprep.mubr.bf16.mxu0 0
        %1026 = vmatmul.mubr.bf16.gmra.mrb[0].mxu0 %v543
        %v1027 = vpop.f32.mrb[0].mxu0
        %v1028 = vadd.f32 0.0, %v1027
        %v1029 = vpop.f32.mrb[0].mxu0
        %v1030 = vadd.f32 0.0, %v1029
        %v1031 = vpop.f32.mrb[0].mxu0
        %v1032 = vadd.f32 0.0, %v1031
        %v1033 = vpop.f32.mrb[0].mxu0
        %v1034 = vadd.f32 0.0, %v1033
        %1035 = vdwg.mxu0
        %v1036 = vmax.f32 %v899, %v903
        %v1037 = vrot.slane %v1036, 4
        %v1038 = vmax.f32 %v1036, %v1037
        %v1039 = vrot.slane %v1038, 2
        %v1040 = vmax.f32 %v1038, %v1039
        %v1041 = vrot.slane %v1040, 1
        %v1042 = vmax.f32 %v1040, %v1041
        %v1043 = vmax.f32 %v901, %v905
        %v1044 = vrot.slane %v1043, 4
        %v1045 = vmax.f32 %v1043, %v1044
        %v1046 = vrot.slane %v1045, 2
        %v1047 = vmax.f32 %v1045, %v1046
        %v1048 = vrot.slane %v1047, 1
        %v1049 = vmax.f32 %v1047, %v1048
        %v1050 = vmax.f32 %v942, %v946
        %v1051 = vrot.slane %v1050, 4
        %v1052 = vmax.f32 %v1050, %v1051
        %v1053 = vrot.slane %v1052, 2
        %v1054 = vmax.f32 %v1052, %v1053
        %v1055 = vrot.slane %v1054, 1
        %v1056 = vmax.f32 %v1054, %v1055
        %v1057 = vmax.f32 %v944, %v948
        %v1058 = vrot.slane %v1057, 4
        %v1059 = vmax.f32 %v1057, %v1058
        %v1060 = vrot.slane %v1059, 2
        %v1061 = vmax.f32 %v1059, %v1060
        %v1062 = vrot.slane %v1061, 1
        %v1063 = vmax.f32 %v1061, %v1062
        %v1064 = vmax.f32 %v985, %v989
        %v1065 = vrot.slane %v1064, 4
        %v1066 = vmax.f32 %v1064, %v1065
        %v1067 = vrot.slane %v1066, 2
        %v1068 = vmax.f32 %v1066, %v1067
        %v1069 = vrot.slane %v1068, 1
        %v1070 = vmax.f32 %v1068, %v1069
        %v1071 = vmax.f32 %v987, %v991
        %v1072 = vrot.slane %v1071, 4
        %v1073 = vmax.f32 %v1071, %v1072
        %v1074 = vrot.slane %v1073, 2
        %v1075 = vmax.f32 %v1073, %v1074
        %v1076 = vrot.slane %v1075, 1
        %v1077 = vmax.f32 %v1075, %v1076
        %v1078 = vmax.f32 %v1028, %v1032
        %v1079 = vrot.slane %v1078, 4
        %v1080 = vmax.f32 %v1078, %v1079
        %v1081 = vrot.slane %v1080, 2
        %v1082 = vmax.f32 %v1080, %v1081
        %v1083 = vrot.slane %v1082, 1
        %v1084 = vmax.f32 %v1082, %v1083
        %v1085 = vmax.f32 %v1030, %v1034
        %v1086 = vrot.slane %v1085, 4
        %v1087 = vmax.f32 %v1085, %v1086
        %v1088 = vrot.slane %v1087, 2
        %v1089 = vmax.f32 %v1087, %v1088
        %v1090 = vrot.slane %v1089, 1
        %v1091 = vmax.f32 %v1089, %v1090
        %v1092 = vcombine.low %v1042, %v1056
        %v1094 = vunpack.c.l.s4 1983009808
        %v1095 = vunpack.c.0.s8 %v1094
        %v1096 = vlaneseq
        %v1097 = vshrl.u32 %v1096, 7
        %v1098 = vsub.s32 %v1095, %v1097
        %v1099 = vrot.slane %v1092, %v1098
        %v1100 = vcombine.low %v1049, %v1063
        %v1102 = vunpack.c.l.s4 1983009808
        %v1103 = vunpack.c.0.s8 %v1102
        %v1104 = vlaneseq
        %v1105 = vshrl.u32 %v1104, 7
        %v1106 = vsub.s32 %v1103, %v1105
        %v1107 = vrot.slane %v1100, %v1106
        %v1108 = vcombine.low %v1070, %v1084
        %v1110 = vunpack.c.l.s4 1983009808
        %v1111 = vunpack.c.0.s8 %v1110
        %v1112 = vlaneseq
        %v1113 = vshrl.u32 %v1112, 7
        %v1114 = vsub.s32 %v1111, %v1113
        %v1115 = vrot.slane %v1108, %v1114
        %v1116 = vcombine.low %v1077, %v1091
        %v1118 = vunpack.c.l.s4 1983009808
        %v1119 = vunpack.c.0.s8 %v1118
        %v1120 = vlaneseq
        %v1121 = vshrl.u32 %v1120, 7
        %v1122 = vsub.s32 %v1119, %v1121
        %v1123 = vrot.slane %v1116, %v1122
        %v1124 = vcombine.low %v1099, %v1107
        %v1126 = vunpack.c.l.s4 1934713408
        %v1127 = vunpack.c.0.s8 %v1126
        %v1128 = vlaneseq
        %v1129 = vshrl.u32 %v1128, 7
        %v1130 = vsub.s32 %v1127, %v1129
        %v1131 = vrot.slane %v1124, %v1130
        %v1132 = vcombine.low %v1115, %v1123
        %v1134 = vunpack.c.l.s4 1934713408
        %v1135 = vunpack.c.0.s8 %v1134
        %v1136 = vlaneseq
        %v1137 = vshrl.u32 %v1136, 7
        %v1138 = vsub.s32 %v1135, %v1137
        %v1139 = vrot.slane %v1132, %v1138
        %v1140 = vcombine.low %v1131, %v1139
        %p1141 = scmp.eq.s32.totalorder %s26, 0
        // Predicated region
        $region49: #{tpu_custom_call.1} parent=43 // pred_check
          %p1142 = pneg %p1141
        $region50: #{tpu_custom_call.1} parent=43 // pred_check_branch
          %1144 = sbr.rel (%p1142) target = $region52
        $region51: #{tpu_custom_call.1} parent=43 // pred_region
          %1145 = vst [vmem:[%s282] sm:$0xff] %v1140
        $region52: #{tpu_custom_call.1} parent=43 // pred_fallthru
          _
        %p1146 = scmp.gt.s32.totalorder %s26, 0
        // Predicated region
        $region53: #{tpu_custom_call.1} parent=43 // pred_check
          %p1147 = pneg %p1146
        $region54: #{tpu_custom_call.1} parent=43 // pred_check_branch
          %1149 = sbr.rel (%p1147) target = $region56
        $region55: #{tpu_custom_call.1} parent=43 // pred_region
          %v1150 = vld [vmem:[%s282] sm:$0xff]
          %v1151 = vmax.f32 %v1150, %v1140
          %1152 = vst [vmem:[%s282] sm:$0xff] %v1151
        $region56: #{tpu_custom_call.1} parent=43 // pred_fallthru
          _
        %s1153 = sand.u32 %s174, 1
        %s1154 = scalar_lea.sflag [#allocation4], %s1153
        %s1155 = sand.u32 %s174, 1
        %s1156 = smul.addr %s1155, 8
        %s1157 = scalar_lea.vmem [#allocation5], %s1156
        // Predicated region
        $region57: #{tpu_custom_call.1} parent=43 // pred_check
          %p1158 = pneg %p184
        $region58: #{tpu_custom_call.1} parent=43 // pred_check_branch
          %1160 = sbr.rel (%p1158) target = $region60
        $region59: #{tpu_custom_call.1} parent=43 // pred_region
          %s1162 = ssub.s32 128, 128
          %1163 = vsyncadd %s1154, %s1162
          %s1164 = smul.addr %s25, 128
          %s1165 = scalar_lea.hbm %s6, %s1164
          %s1167 = sshll.u32 %s1157, 4
          %s1168 = int_to_ptr.vmem [resolvable:$true] %s1167
          %1170 = dma.vmem_to_hbm [thread:$0]  %s1168, 128, %s1165, %s1154
        $region60: #{tpu_custom_call.1} parent=43 // pred_fallthru
          _
      $region44: #{tpu_custom_call.1} parent=5 // pred_fallthru
        _
      %p1171 = scmp.le.s32.totalorder 2, %s16
      // Predicated region
      $region61: #{tpu_custom_call.1} parent=5 // pred_check
        %p1172 = pneg %p1171
      $region62: #{tpu_custom_call.1} parent=5 // pred_check_branch
        %1174 = sbr.rel (%p1172) target = $region64
      $region63: #{tpu_custom_call.1} parent=5 // pred_region
        %s1175 = ssub.s32 %s16, 2
        // Predicated region
        $region65: #{tpu_custom_call.1} parent=63 // pred_check
          %p1176 = pneg %p190
        $region66: #{tpu_custom_call.1} parent=63 // pred_check_branch
          %1178 = sbr.rel (%p1176) target = $region68
        $region67: #{tpu_custom_call.1} parent=63 // pred_region
          %s1179 = sand.u32 %s175, 1
          %s1180 = scalar_lea.sflag [#allocation4], %s1179
          %s1181 = sand.u32 %s175, 1
          %s1182 = smul.addr %s1181, 8
          %s1183 = scalar_lea.vmem [#allocation5], %s1182
          %1184 = dma.done %s1180, 128
        $region68: #{tpu_custom_call.1} parent=63 // pred_fallthru
          _
      $region64: #{tpu_custom_call.1} parent=5 // pred_fallthru
        _
    $region6: #{tpu_custom_call.1} parent=1 // loop_footer
      %s20 = sadd.s32 1, %s16
    $region7: #{tpu_custom_call.1} parent=1 // loop_footer_branch
      %15 = sbr.rel target = $region3
    $region8: #{tpu_custom_call.1} parent=1 // loop_exit
      _
    %1185 = vsyncpa [#allocation3], 1
    %s1186 = scalar_lea.sflag [#allocation3], 1
    %1187 = vsyncpa %s1186, 1
    %1188 = vsyncpa [#allocation4], 1
    %s1189 = scalar_lea.sflag [#allocation4], 1
    %1190 = vsyncpa %s1189, 1

</llo_original>
